<compile_context>
chip_gen: v7x
topology: tpu7x:2x2x1
jax: 0.10.0
libtpu: 0.0.40
codegen_flags: <defaults>
</compile_context>

<pallas_src>
import functools

import jax
import jax.numpy as jnp
from jax.experimental import pallas as pl
from jax.experimental.pallas import tpu as pltpu


def _round_up(x, m):
    return (x + m - 1) // m * m


def _embedding_kernel(x_ref, wp_ref,
                      w_hw0_ref, b_hw0_ref,
                      w_hw1_ref, b_hw1_ref,
                      o_ref, *, hp):
    # x_ref:    (TM, Ep)     tile of the flattened, padded input
    # wp_ref:   (Ep, Hp)     projection weight (pre-transposed, zero-padded)
    # w_hw*:    (Hp, 2*Hp)   fused [transform | gate] weights per highway layer
    # b_hw*:    (1, 2*Hp)    fused [transform | gate] biases   per highway layer
    # o_ref:    (TM, Hp)     output tile (lane-dense, Hp % 128 == 0)

    # TODO(synk): dropout(drop_prob) is identity in eval mode; training-mode
    # dropout (pltpu.prng_random_bits masking) is not implemented here.

    x = x_ref[...]

    # Projection (Linear, no bias). Cast the activation operand to the weight
    # dtype so bf16 weights take the bf16 MXU path; accumulate in f32.
    h = jnp.dot(x.astype(wp_ref.dtype), wp_ref[...],
                preferred_element_type=jnp.float32)

    # Two highway layers, each as a single fused (Hp, 2*Hp) matmul.
    for w_ref, b_ref in ((w_hw0_ref, b_hw0_ref), (w_hw1_ref, b_hw1_ref)):
        z = jnp.dot(h.astype(w_ref.dtype), w_ref[...],
                    preferred_element_type=jnp.float32)
        z = z + b_ref[...].astype(jnp.float32)          # single broadcast add
        t = jnp.maximum(z[:, :hp], 0.0)                 # transform half (ReLU)
        g = jax.nn.sigmoid(z[:, hp:])                   # gate half (sigmoid)
        h = g * t + (1.0 - g) * h

    o_ref[...] = h.astype(o_ref.dtype)


@functools.partial(jax.jit, static_argnames=("tm", "weight_dtype"))
def embedding_forward(x, params, *, tm=512, weight_dtype=None):
    """x: (B, S, E). Returns (B, S, H).

    tm: target rows-per-tile (clamped to the problem size, multiple of 8).
    weight_dtype: optional matmul-operand dtype (e.g. jnp.bfloat16 on v6e/v7x).
    """
    B, S, E = x.shape
    H = params["w_proj"].shape[1]
    M = B * S

    # Lane-dense padded dims (multiples of 128) and M tiling.
    Ep = _round_up(E, 128)
    Hp = _round_up(H, 128)
    tm_eff = _round_up(min(tm, _round_up(M, 8)), 8)
    M_pad = _round_up(M, tm_eff)
    grid = (M_pad // tm_eff,)

    wdt = weight_dtype if weight_dtype is not None else params["w_proj"].dtype

    def pad2(w, rows, cols):
        return jnp.pad(w, ((0, rows - w.shape[0]), (0, cols - w.shape[1])))

    # Pack / pad weights. Zero padding keeps padded output columns exactly 0.
    wp = pad2(params["w_proj"], Ep, Hp).astype(wdt)
    w_hw0 = jnp.concatenate(
        [pad2(params["wt0"], Hp, Hp), pad2(params["wg0"], Hp, Hp)], axis=1).astype(wdt)
    b_hw0 = jnp.concatenate(
        [pad2(params["bt0"], 1, Hp), pad2(params["bg0"], 1, Hp)], axis=1).astype(jnp.float32)
    w_hw1 = jnp.concatenate(
        [pad2(params["wt1"], Hp, Hp), pad2(params["wg1"], Hp, Hp)], axis=1).astype(wdt)
    b_hw1 = jnp.concatenate(
        [pad2(params["bt1"], 1, Hp), pad2(params["bg1"], 1, Hp)], axis=1).astype(jnp.float32)

    x2d = jnp.pad(x.reshape(M, E), ((0, M_pad - M), (0, Ep - E)))

    full = lambda shape: pl.BlockSpec(shape, lambda i: (0,) * len(shape))

    out2d = pl.pallas_call(
        functools.partial(_embedding_kernel, hp=Hp),
        out_shape=jax.ShapeDtypeStruct((M_pad, Hp), x.dtype),
        grid_spec=pltpu.PrefetchScalarGridSpec(
            num_scalar_prefetch=0,
            grid=grid,
            in_specs=[
                pl.BlockSpec((tm_eff, Ep), lambda i: (i, 0)),  # x tile
                full((Ep, Hp)),                                # W_proj^T
                full((Hp, 2 * Hp)), full((1, 2 * Hp)),         # fused highway 0
                full((Hp, 2 * Hp)), full((1, 2 * Hp)),         # fused highway 1
            ],
            out_specs=pl.BlockSpec((tm_eff, Hp), lambda i: (i, 0)),
        ),
        compiler_params=pltpu.CompilerParams(
            dimension_semantics=("parallel",)),
    )(x2d, wp, w_hw0, b_hw0, w_hw1, b_hw1)

    return out2d[:M, :H].reshape(B, S, H)


def init_params(key, embedding_size, hidden_size):
    """Deterministic synthetic params. Linear weights stored as (in, out)."""
    ks = jax.random.split(key, 10)
    sc_p = 1.0 / jnp.sqrt(embedding_size)
    sc_h = 1.0 / jnp.sqrt(hidden_size)
    u = lambda k, shape, s: jax.random.uniform(k, shape, jnp.float32, -s, s)
    return {
        "w_proj": u(ks[0], (embedding_size, hidden_size), sc_p),
        "wt0": u(ks[1], (hidden_size, hidden_size), sc_h),
        "bt0": u(ks[2], (1, hidden_size), sc_h),
        "wg0": u(ks[3], (hidden_size, hidden_size), sc_h),
        "bg0": u(ks[4], (1, hidden_size), sc_h),
        "wt1": u(ks[5], (hidden_size, hidden_size), sc_h),
        "bt1": u(ks[6], (1, hidden_size), sc_h),
        "wg1": u(ks[7], (hidden_size, hidden_size), sc_h),
        "bg1": u(ks[8], (1, hidden_size), sc_h),
    }


def reference_forward(x, params):
    """Pure-JAX reference matching the PyTorch module (eval mode)."""
    h = x @ params["w_proj"]
    for li in ("0", "1"):
        g = jax.nn.sigmoid(h @ params["wg" + li] + params["bg" + li])
        t = jnp.maximum(h @ params["wt" + li] + params["bt" + li], 0.0)
        h = g * t + (1.0 - g) * h
    return h


if __name__ == "__main__":
    batch, seq, embedding_size, hidden_size = 2, 8, 64, 32
    drop_prob = 0.1  # eval mode -> dropout is identity

    key = jax.random.PRNGKey(0)
    kx, kp = jax.random.split(key)
    x = jax.random.normal(kx, (batch, seq, embedding_size), dtype=jnp.float32)
    params = init_params(kp, embedding_size, hidden_size)

    out = embedding_forward(x, params)
    out = jax.block_until_ready(out)

    ref = reference_forward(x, params)
    assert out.shape == (batch, seq, hidden_size)
    assert jnp.allclose(out, ref, atol=1e-5, rtol=1e-5), "mismatch vs reference"

    print("KERNEL_OK")
</pallas_src>

<mosaic_0001>
module attributes {stable_mosaic.version = 11 : i64} {
  func.func @_embedding_kernel(%arg0: i32, %arg1: memref<16x128xf32, #tpu.memory_space<vmem>>, %arg2: memref<128x128xf32, #tpu.memory_space<vmem>>, %arg3: memref<128x256xf32, #tpu.memory_space<vmem>>, %arg4: memref<1x256xf32, #tpu.memory_space<vmem>>, %arg5: memref<128x256xf32, #tpu.memory_space<vmem>>, %arg6: memref<1x256xf32, #tpu.memory_space<vmem>>, %arg7: memref<16x128xf32, #tpu.memory_space<vmem>>) attributes {dimension_semantics = [#tpu.dimension_semantics<parallel>], iteration_bounds = array<i64: 1>, scalar_prefetch = 0 : i64, scratch_operands = 0 : i64, tpu.core_type = #tpu.core_type<tc>, window_params = [{transform_indices = @transform_0, window_bounds = array<i64: 16, 128>}, {pipeline_mode = #tpu.pipeline_mode<synchronous>, transform_indices = @transform_1, window_bounds = array<i64: 128, 128>}, {pipeline_mode = #tpu.pipeline_mode<synchronous>, transform_indices = @transform_2, window_bounds = array<i64: 128, 256>}, {pipeline_mode = #tpu.pipeline_mode<synchronous>, transform_indices = @transform_3, window_bounds = array<i64: 1, 256>}, {pipeline_mode = #tpu.pipeline_mode<synchronous>, transform_indices = @transform_4, window_bounds = array<i64: 128, 256>}, {pipeline_mode = #tpu.pipeline_mode<synchronous>, transform_indices = @transform_5, window_bounds = array<i64: 1, 256>}, {transform_indices = @transform_6, window_bounds = array<i64: 16, 128>}]} {
    %c0 = arith.constant 0 : index
    %c0_0 = arith.constant 0 : index
    %0 = vector.load %arg1[%c0, %c0_0] : memref<16x128xf32, #tpu.memory_space<vmem>>, vector<16x128xf32>
    %c0_1 = arith.constant 0 : index
    %c0_2 = arith.constant 0 : index
    %1 = vector.load %arg2[%c0_1, %c0_2] : memref<128x128xf32, #tpu.memory_space<vmem>>, vector<128x128xf32>
    %cst = arith.constant dense<0.000000e+00> : vector<16x128xf32>
    %2 = tpu.matmul %0, %1, %cst {dimension_numbers = #tpu.dot_dimension_numbers<[1], [0], [0], [1], [0, 0, 1, 1], [], []>} : vector<16x128xf32>, vector<128x128xf32>, vector<16x128xf32> -> vector<16x128xf32>
    %c0_3 = arith.constant 0 : index
    %c0_4 = arith.constant 0 : index
    %3 = vector.load %arg3[%c0_3, %c0_4] : memref<128x256xf32, #tpu.memory_space<vmem>>, vector<128x256xf32>
    %cst_5 = arith.constant dense<0.000000e+00> : vector<16x256xf32>
    %4 = tpu.matmul %2, %3, %cst_5 {dimension_numbers = #tpu.dot_dimension_numbers<[1], [0], [0], [1], [0, 0, 1, 1], [], []>} : vector<16x128xf32>, vector<128x256xf32>, vector<16x256xf32> -> vector<16x256xf32>
    %c0_6 = arith.constant 0 : index
    %c0_7 = arith.constant 0 : index
    %5 = vector.load %arg4[%c0_6, %c0_7] : memref<1x256xf32, #tpu.memory_space<vmem>>, vector<1x256xf32>
    %6 = vector.broadcast %5 : vector<1x256xf32> to vector<16x256xf32>
    %7 = arith.addf %4, %6 : vector<16x256xf32>
    %8 = vector.extract_strided_slice %7 {offsets = [0, 0], sizes = [16, 128], strides = [1, 1]} : vector<16x256xf32> to vector<16x128xf32>
    %cst_8 = arith.constant 0.000000e+00 : f32
    %9 = vector.broadcast %cst_8 : f32 to vector<16x128xf32>
    %10 = arith.maximumf %8, %9 : vector<16x128xf32>
    %11 = vector.extract_strided_slice %7 {offsets = [0, 128], sizes = [16, 128], strides = [1, 1]} : vector<16x256xf32> to vector<16x128xf32>
    %12 = arith.negf %11 : vector<16x128xf32>
    %13 = math.exp %12 : vector<16x128xf32>
    %cst_9 = arith.constant 1.000000e+00 : f32
    %14 = vector.broadcast %cst_9 : f32 to vector<16x128xf32>
    %15 = arith.addf %14, %13 : vector<16x128xf32>
    %16 = arith.divf %14, %15 : vector<16x128xf32>
    %17 = arith.mulf %16, %10 : vector<16x128xf32>
    %cst_10 = arith.constant 1.000000e+00 : f32
    %18 = vector.broadcast %cst_10 : f32 to vector<16x128xf32>
    %19 = arith.subf %18, %16 : vector<16x128xf32>
    %20 = arith.mulf %19, %2 : vector<16x128xf32>
    %21 = arith.addf %17, %20 : vector<16x128xf32>
    %c0_11 = arith.constant 0 : index
    %c0_12 = arith.constant 0 : index
    %22 = vector.load %arg5[%c0_11, %c0_12] : memref<128x256xf32, #tpu.memory_space<vmem>>, vector<128x256xf32>
    %cst_13 = arith.constant dense<0.000000e+00> : vector<16x256xf32>
    %23 = tpu.matmul %21, %22, %cst_13 {dimension_numbers = #tpu.dot_dimension_numbers<[1], [0], [0], [1], [0, 0, 1, 1], [], []>} : vector<16x128xf32>, vector<128x256xf32>, vector<16x256xf32> -> vector<16x256xf32>
    %c0_14 = arith.constant 0 : index
    %c0_15 = arith.constant 0 : index
    %24 = vector.load %arg6[%c0_14, %c0_15] : memref<1x256xf32, #tpu.memory_space<vmem>>, vector<1x256xf32>
    %25 = vector.broadcast %24 : vector<1x256xf32> to vector<16x256xf32>
    %26 = arith.addf %23, %25 : vector<16x256xf32>
    %27 = vector.extract_strided_slice %26 {offsets = [0, 0], sizes = [16, 128], strides = [1, 1]} : vector<16x256xf32> to vector<16x128xf32>
    %cst_16 = arith.constant 0.000000e+00 : f32
    %28 = vector.broadcast %cst_16 : f32 to vector<16x128xf32>
    %29 = arith.maximumf %27, %28 : vector<16x128xf32>
    %30 = vector.extract_strided_slice %26 {offsets = [0, 128], sizes = [16, 128], strides = [1, 1]} : vector<16x256xf32> to vector<16x128xf32>
    %31 = arith.negf %30 : vector<16x128xf32>
    %32 = math.exp %31 : vector<16x128xf32>
    %cst_17 = arith.constant 1.000000e+00 : f32
    %33 = vector.broadcast %cst_17 : f32 to vector<16x128xf32>
    %34 = arith.addf %33, %32 : vector<16x128xf32>
    %35 = arith.divf %33, %34 : vector<16x128xf32>
    %36 = arith.mulf %35, %29 : vector<16x128xf32>
    %cst_18 = arith.constant 1.000000e+00 : f32
    %37 = vector.broadcast %cst_18 : f32 to vector<16x128xf32>
    %38 = arith.subf %37, %35 : vector<16x128xf32>
    %39 = arith.mulf %38, %21 : vector<16x128xf32>
    %40 = arith.addf %36, %39 : vector<16x128xf32>
    %c0_19 = arith.constant 0 : index
    %c0_20 = arith.constant 0 : index
    %41 = vector.load %arg7[%c0_19, %c0_20] : memref<16x128xf32, #tpu.memory_space<vmem>>, vector<16x128xf32>
    tpu.vector_store %arg7[%c0_19, %c0_20], %40 {strides = array<i32>} : memref<16x128xf32, #tpu.memory_space<vmem>>, vector<16x128xf32>,
    return
  }
  func.func @transform_0(%arg0: i32) -> (i32, i32) {
    %c0_i32 = arith.constant 0 : i32
    %c0_i32_0 = arith.constant 0 : i32
    return %arg0, %c0_i32 : i32, i32
  }
  func.func @transform_1(%arg0: i32) -> (i32, i32) {
    %c0_i32 = arith.constant 0 : i32
    %c0_i32_0 = arith.constant 0 : i32
    %c0_i32_1 = arith.constant 0 : i32
    return %c0_i32, %c0_i32_0 : i32, i32
  }
  func.func @transform_2(%arg0: i32) -> (i32, i32) {
    %c0_i32 = arith.constant 0 : i32
    %c0_i32_0 = arith.constant 0 : i32
    %c0_i32_1 = arith.constant 0 : i32
    return %c0_i32, %c0_i32_0 : i32, i32
  }
  func.func @transform_3(%arg0: i32) -> (i32, i32) {
    %c0_i32 = arith.constant 0 : i32
    %c0_i32_0 = arith.constant 0 : i32
    %c0_i32_1 = arith.constant 0 : i32
    return %c0_i32, %c0_i32_0 : i32, i32
  }
  func.func @transform_4(%arg0: i32) -> (i32, i32) {
    %c0_i32 = arith.constant 0 : i32
    %c0_i32_0 = arith.constant 0 : i32
    %c0_i32_1 = arith.constant 0 : i32
    return %c0_i32, %c0_i32_0 : i32, i32
  }
  func.func @transform_5(%arg0: i32) -> (i32, i32) {
    %c0_i32 = arith.constant 0 : i32
    %c0_i32_0 = arith.constant 0 : i32
    %c0_i32_1 = arith.constant 0 : i32
    return %c0_i32, %c0_i32_0 : i32, i32
  }
  func.func @transform_6(%arg0: i32) -> (i32, i32) {
    %c0_i32 = arith.constant 0 : i32
    %c0_i32_0 = arith.constant 0 : i32
    return %arg0, %c0_i32 : i32, i32
  }
}

</mosaic_0001>

<llo_original>
// kernel: embedding_forward.1
$region0: #{embedding_forward.1}
  #allocation0 [shape = 'u32[]', space=smem, size = 0x4, offset = 0x4, fixed_abs, tag = 'smem constant byte address 0x4 - core index']
  #allocation1 [shape = 'u32[144,128]{1,0:T(1,128)}', space=vmem, size = 0x12000, scoped, tag = 'internal scratch']
  %s0 = inlined_call_operand.vmem [shape: f32[16,128], index: 0, kind: input, shape index: {}]
  %s1 = inlined_call_operand.vmem [shape: f32[128,128], index: 1, kind: input, shape index: {}]
  %s2 = inlined_call_operand.vmem [shape: f32[128,256], index: 2, kind: input, shape index: {}]
  %s3 = inlined_call_operand.vmem [shape: f32[1,256], index: 3, kind: input, shape index: {}]
  %s4 = inlined_call_operand.vmem [shape: f32[128,256], index: 4, kind: input, shape index: {}]
  %s5 = inlined_call_operand.vmem [shape: f32[1,256], index: 5, kind: input, shape index: {}]
  %s6 = inlined_call_operand.vmem [shape: f32[16,128], index: 6, kind: output, shape index: {}]
  %s7 = sld [smem:[#allocation0]]
  $region34: #{embedding_forward.1} parent=0
    _
  %s9 = ssub.s32 1, %s7
  %s10 = scalar_select 0, %s9, %s7
  // Predicated region
  $region2: #{embedding_forward.1} parent=0 // pred_check
    _
  $region3: #{embedding_forward.1} parent=0 // pred_check_branch
    %12 = sbr.rel (0) target = $region5
  $region4: #{embedding_forward.1} parent=0 // pred_region
    _
  $region5: #{embedding_forward.1} parent=0 // pred_fallthru
    _
  // Predicated region
  $region6: #{embedding_forward.1} parent=0 // pred_check
    _
  $region7: #{embedding_forward.1} parent=0 // pred_check_branch
    %14 = sbr.rel (0) target = $region9
  $region8: #{embedding_forward.1} parent=0 // pred_region
    _
  $region9: #{embedding_forward.1} parent=0 // pred_fallthru
    _
  // Predicated region
  $region10: #{embedding_forward.1} parent=0 // pred_check
    _
  $region11: #{embedding_forward.1} parent=0 // pred_check_branch
    %16 = sbr.rel (0) target = $region13
  $region12: #{embedding_forward.1} parent=0 // pred_region
    _
  $region13: #{embedding_forward.1} parent=0 // pred_fallthru
    _
  // Predicated region
  $region14: #{embedding_forward.1} parent=0 // pred_check
    _
  $region15: #{embedding_forward.1} parent=0 // pred_check_branch
    %18 = sbr.rel (0) target = $region17
  $region16: #{embedding_forward.1} parent=0 // pred_region
    _
  $region17: #{embedding_forward.1} parent=0 // pred_fallthru
    _
  // Predicated region
  $region18: #{embedding_forward.1} parent=0 // pred_check
    _
  $region19: #{embedding_forward.1} parent=0 // pred_check_branch
    %20 = sbr.rel (0) target = $region21
  $region20: #{embedding_forward.1} parent=0 // pred_region
    _
  $region21: #{embedding_forward.1} parent=0 // pred_fallthru
    _
  // Predicated region
  $region22: #{embedding_forward.1} parent=0 // pred_check
    _
  $region23: #{embedding_forward.1} parent=0 // pred_check_branch
    %22 = sbr.rel (0) target = $region25
  $region24: #{embedding_forward.1} parent=0 // pred_region
    _
  $region25: #{embedding_forward.1} parent=0 // pred_fallthru
    _
  %v23 = vld [vmem:[%s0] sm:$0xff]
  %v24 = vld [vmem:[%s0 + $0x8] sm:$0xff]
  %v25 = vld [vmem:[%s1] sm:$0xff]
  %v26 = vld [vmem:[%s1 + $0x8] sm:$0xff]
  %v27 = vld [vmem:[%s1 + $0x10] sm:$0xff]
  %v28 = vld [vmem:[%s1 + $0x18] sm:$0xff]
  %v29 = vld [vmem:[%s1 + $0x20] sm:$0xff]
  %v30 = vld [vmem:[%s1 + $0x28] sm:$0xff]
  %v31 = vld [vmem:[%s1 + $0x30] sm:$0xff]
  %v32 = vld [vmem:[%s1 + $0x38] sm:$0xff]
  %v33 = vld [vmem:[%s1 + $0x40] sm:$0xff]
  %v34 = vld [vmem:[%s1 + $0x48] sm:$0xff]
  %v35 = vld [vmem:[%s1 + $0x50] sm:$0xff]
  %v36 = vld [vmem:[%s1 + $0x58] sm:$0xff]
  %v37 = vld [vmem:[%s1 + $0x60] sm:$0xff]
  %v38 = vld [vmem:[%s1 + $0x68] sm:$0xff]
  %v39 = vld [vmem:[%s1 + $0x70] sm:$0xff]
  %v40 = vld [vmem:[%s1 + $0x78] sm:$0xff]
  %41 = vmatprep.subr.mxu0 0.0
  %42 = vmatpush1.msra.mxu0 %v25
  %43 = vmatprep.subr.mxu0 0.0
  %44 = vmatpush1.msra.mxu0 %v26
  %45 = vmatprep.subr.mxu0 0.0
  %46 = vmatpush1.msra.mxu0 %v27
  %47 = vmatprep.subr.mxu0 0.0
  %48 = vmatpush1.msra.mxu0 %v28
  %49 = vmatprep.subr.mxu0 0.0
  %50 = vmatpush1.msra.mxu0 %v29
  %51 = vmatprep.subr.mxu0 0.0
  %52 = vmatpush1.msra.mxu0 %v30
  %53 = vmatprep.subr.mxu0 0.0
  %54 = vmatpush1.msra.mxu0 %v31
  %55 = vmatprep.subr.mxu0 0.0
  %56 = vmatpush1.msra.mxu0 %v32
  %57 = vmatprep.subr.mxu0 0.0
  %58 = vmatpush1.msra.mxu0 %v33
  %59 = vmatprep.subr.mxu0 0.0
  %60 = vmatpush1.msra.mxu0 %v34
  %61 = vmatprep.subr.mxu0 0.0
  %62 = vmatpush1.msra.mxu0 %v35
  %63 = vmatprep.subr.mxu0 0.0
  %64 = vmatpush1.msra.mxu0 %v36
  %65 = vmatprep.subr.mxu0 0.0
  %66 = vmatpush1.msra.mxu0 %v37
  %67 = vmatprep.subr.mxu0 0.0
  %68 = vmatpush1.msra.mxu0 %v38
  %69 = vmatprep.subr.mxu0 0.0
  %70 = vmatpush1.msra.mxu0 %v39
  %71 = vmatprep.subr.mxu0 0.0
  %72 = vmatpush1.msra.mxu0 %v40
  %73 = vmatprep.subr.mxu0 0.0
  %74 = vmatpush1.msra.mxu0 0.0
  %75 = vmatprep.subr.mxu0 0.0
  %76 = vmatpush1.msra.mxu0 0.0
  %77 = vmatprep.subr.mxu0 0.0
  %78 = vmatpush1.msra.mxu0 0.0
  %79 = vmatprep.subr.mxu0 0.0
  %80 = vmatpush1.msra.mxu0 0.0
  %81 = vmatprep.subr.mxu0 0.0
  %82 = vmatpush1.msra.mxu0 0.0
  %83 = vmatprep.subr.mxu0 0.0
  %84 = vmatpush1.msra.mxu0 0.0
  %85 = vmatprep.subr.mxu0 0.0
  %86 = vmatpush1.msra.mxu0 0.0
  %87 = vmatprep.subr.mxu0 0.0
  %88 = vmatpush1.msra.mxu0 0.0
  %89 = vmatprep.subr.mxu0 0.0
  %90 = vmatpush1.msra.mxu0 0.0
  %91 = vmatprep.subr.mxu0 0.0
  %92 = vmatpush1.msra.mxu0 0.0
  %93 = vmatprep.subr.mxu0 0.0
  %94 = vmatpush1.msra.mxu0 0.0
  %95 = vmatprep.subr.mxu0 0.0
  %96 = vmatpush1.msra.mxu0 0.0
  %97 = vmatprep.subr.mxu0 0.0
  %98 = vmatpush1.msra.mxu0 0.0
  %99 = vmatprep.subr.mxu0 0.0
  %100 = vmatpush1.msra.mxu0 0.0
  %101 = vmatprep.subr.mxu0 0.0
  %102 = vmatpush1.msra.mxu0 0.0
  %103 = vmatprep.subr.mxu0 0.0
  %104 = vmatpush1.msra.mxu0 0.0
  %105 = vmatprep.mubr.f32.mxu0 0.0
  %106 = vmatmul.mubr.f32.gmra.mrb[0].mxu0 %v23
  %v107 = vpop.f32.mrb[0].mxu0
  %v108 = vadd.f32 0.0, %v107
  %v109 = vpop.f32.mrb[0].mxu0
  %110 = vmatprep.mubr.f32.mxu0 0.0
  %111 = vmatmul.mubr.f32.gmra.mrb[0].mxu0 %v24
  %v112 = vpop.f32.mrb[0].mxu0
  %v113 = vadd.f32 0.0, %v112
  %v114 = vpop.f32.mrb[0].mxu0
  %115 = vdwg.mxu0
  %v116 = vld [vmem:[%s2] sm:$0xff]
  %v117 = vld [vmem:[%s2 + $0x8] sm:$0xff]
  %v118 = vld [vmem:[%s2 + $0x10] sm:$0xff]
  %v119 = vld [vmem:[%s2 + $0x18] sm:$0xff]
  %v120 = vld [vmem:[%s2 + $0x20] sm:$0xff]
  %v121 = vld [vmem:[%s2 + $0x28] sm:$0xff]
  %v122 = vld [vmem:[%s2 + $0x30] sm:$0xff]
  %v123 = vld [vmem:[%s2 + $0x38] sm:$0xff]
  %v124 = vld [vmem:[%s2 + $0x40] sm:$0xff]
  %v125 = vld [vmem:[%s2 + $0x48] sm:$0xff]
  %v126 = vld [vmem:[%s2 + $0x50] sm:$0xff]
  %v127 = vld [vmem:[%s2 + $0x58] sm:$0xff]
  %v128 = vld [vmem:[%s2 + $0x60] sm:$0xff]
  %v129 = vld [vmem:[%s2 + $0x68] sm:$0xff]
  %v130 = vld [vmem:[%s2 + $0x70] sm:$0xff]
  %v131 = vld [vmem:[%s2 + $0x78] sm:$0xff]
  %v132 = vld [vmem:[%s2 + $0x80] sm:$0xff]
  %v133 = vld [vmem:[%s2 + $0x88] sm:$0xff]
  %v134 = vld [vmem:[%s2 + $0x90] sm:$0xff]
  %v135 = vld [vmem:[%s2 + $0x98] sm:$0xff]
  %v136 = vld [vmem:[%s2 + $0xa0] sm:$0xff]
  %v137 = vld [vmem:[%s2 + $0xa8] sm:$0xff]
  %v138 = vld [vmem:[%s2 + $0xb0] sm:$0xff]
  %v139 = vld [vmem:[%s2 + $0xb8] sm:$0xff]
  %v140 = vld [vmem:[%s2 + $0xc0] sm:$0xff]
  %v141 = vld [vmem:[%s2 + $0xc8] sm:$0xff]
  %v142 = vld [vmem:[%s2 + $0xd0] sm:$0xff]
  %v143 = vld [vmem:[%s2 + $0xd8] sm:$0xff]
  %v144 = vld [vmem:[%s2 + $0xe0] sm:$0xff]
  %v145 = vld [vmem:[%s2 + $0xe8] sm:$0xff]
  %v146 = vld [vmem:[%s2 + $0xf0] sm:$0xff]
  %v147 = vld [vmem:[%s2 + $0xf8] sm:$0xff]
  %v148 = vld [vmem:[%s3] sm:$0x3]
  %v150 = vlaneseq
  %v151 = vshrl.u32 %v150, 7
  %v152 = vsub.s32 0, %v151
  %v153 = vrot.slane %v148, %v152
  %v154 = vlaneseq
  %v155 = vshrl.u32 %v154, 7
  %v156 = vsub.s32 1, %v155
  %v157 = vrot.slane %v148, %v156
  %160 = vmatprep.subr.mxu0 %v117
  %161 = vmatpush1.msra.mxu0 %v116
  %162 = vmatprep.subr.mxu0 %v119
  %163 = vmatpush1.msra.mxu0 %v118
  %164 = vmatprep.subr.mxu0 %v121
  %165 = vmatpush1.msra.mxu0 %v120
  %166 = vmatprep.subr.mxu0 %v123
  %167 = vmatpush1.msra.mxu0 %v122
  %168 = vmatprep.subr.mxu0 %v125
  %169 = vmatpush1.msra.mxu0 %v124
  %170 = vmatprep.subr.mxu0 %v127
  %171 = vmatpush1.msra.mxu0 %v126
  %172 = vmatprep.subr.mxu0 %v129
  %173 = vmatpush1.msra.mxu0 %v128
  %174 = vmatprep.subr.mxu0 %v131
  %175 = vmatpush1.msra.mxu0 %v130
  %176 = vmatprep.subr.mxu0 %v133
  %177 = vmatpush1.msra.mxu0 %v132
  %178 = vmatprep.subr.mxu0 %v135
  %179 = vmatpush1.msra.mxu0 %v134
  %180 = vmatprep.subr.mxu0 %v137
  %181 = vmatpush1.msra.mxu0 %v136
  %182 = vmatprep.subr.mxu0 %v139
  %183 = vmatpush1.msra.mxu0 %v138
  %184 = vmatprep.subr.mxu0 %v141
  %185 = vmatpush1.msra.mxu0 %v140
  %186 = vmatprep.subr.mxu0 %v143
  %187 = vmatpush1.msra.mxu0 %v142
  %188 = vmatprep.subr.mxu0 %v145
  %189 = vmatpush1.msra.mxu0 %v144
  %190 = vmatprep.subr.mxu0 %v147
  %191 = vmatpush1.msra.mxu0 %v146
  %192 = vmatprep.subr.mxu0 0.0
  %193 = vmatpush1.msra.mxu0 0.0
  %194 = vmatprep.subr.mxu0 0.0
  %195 = vmatpush1.msra.mxu0 0.0
  %196 = vmatprep.subr.mxu0 0.0
  %197 = vmatpush1.msra.mxu0 0.0
  %198 = vmatprep.subr.mxu0 0.0
  %199 = vmatpush1.msra.mxu0 0.0
  %200 = vmatprep.subr.mxu0 0.0
  %201 = vmatpush1.msra.mxu0 0.0
  %202 = vmatprep.subr.mxu0 0.0
  %203 = vmatpush1.msra.mxu0 0.0
  %204 = vmatprep.subr.mxu0 0.0
  %205 = vmatpush1.msra.mxu0 0.0
  %206 = vmatprep.subr.mxu0 0.0
  %207 = vmatpush1.msra.mxu0 0.0
  %208 = vmatprep.subr.mxu0 0.0
  %209 = vmatpush1.msra.mxu0 0.0
  %210 = vmatprep.subr.mxu0 0.0
  %211 = vmatpush1.msra.mxu0 0.0
  %212 = vmatprep.subr.mxu0 0.0
  %213 = vmatpush1.msra.mxu0 0.0
  %214 = vmatprep.subr.mxu0 0.0
  %215 = vmatpush1.msra.mxu0 0.0
  %216 = vmatprep.subr.mxu0 0.0
  %217 = vmatpush1.msra.mxu0 0.0
  %218 = vmatprep.subr.mxu0 0.0
  %219 = vmatpush1.msra.mxu0 0.0
  %220 = vmatprep.subr.mxu0 0.0
  %221 = vmatpush1.msra.mxu0 0.0
  %222 = vmatprep.subr.mxu0 0.0
  %223 = vmatpush1.msra.mxu0 0.0
  %224 = vmatprep.mubr.f32.mxu0 0.0
  %225 = vmatmul.mubr.f32.gmra.mrb[0].mxu0 %v108
  %v226 = vpop.f32.mrb[0].mxu0
  %v227 = vadd.f32 %v153, %v226
  %v228 = vpop.f32.mrb[0].mxu0
  %v229 = vadd.f32 %v157, %v228
  %230 = vmatprep.mubr.f32.mxu0 0.0
  %231 = vmatmul.mubr.f32.gmra.mrb[0].mxu0 %v113
  %v232 = vpop.f32.mrb[0].mxu0
  %v233 = vadd.f32 %v153, %v232
  %v234 = vpop.f32.mrb[0].mxu0
  %v235 = vadd.f32 %v157, %v234
  %236 = vdwg.mxu0
  %v237 = vmax.f32 %v227, 0.0
  %v238 = vmax.f32 %v233, 0.0
  %v239 = vxor.u32 %v229, 2147483648
  %v240 = vxor.u32 %v235, 2147483648
  %v241 = vmul.f32 %v239, 1.442695
  %v242 = vpow.pop %v241
  %v243 = vmul.f32 %v240, 1.442695
  %v244 = vpow.pop %v243
  %v245 = vadd.f32 %v242, 1.0
  %v246 = vadd.f32 %v244, 1.0
  %v247 = vrcp.pop %v245
  %v248 = vmul.f32 1.0, %v247
  %v249 = vrcp.pop %v246
  %v250 = vmul.f32 1.0, %v249
  %v251 = vmul.f32 %v248, %v237
  %v252 = vmul.f32 %v250, %v238
  %v253 = vsub.f32 1.0, %v248
  %v254 = vsub.f32 1.0, %v250
  %v255 = vmul.f32 %v253, %v108
  %v256 = vmul.f32 %v254, %v113
  %v257 = vadd.f32 %v251, %v255
  %v258 = vadd.f32 %v252, %v256
  %v259 = vld [vmem:[%s4] sm:$0xff]
  %v260 = vld [vmem:[%s4 + $0x8] sm:$0xff]
  %v261 = vld [vmem:[%s4 + $0x10] sm:$0xff]
  %v262 = vld [vmem:[%s4 + $0x18] sm:$0xff]
  %v263 = vld [vmem:[%s4 + $0x20] sm:$0xff]
  %v264 = vld [vmem:[%s4 + $0x28] sm:$0xff]
  %v265 = vld [vmem:[%s4 + $0x30] sm:$0xff]
  %v266 = vld [vmem:[%s4 + $0x38] sm:$0xff]
  %v267 = vld [vmem:[%s4 + $0x40] sm:$0xff]
  %v268 = vld [vmem:[%s4 + $0x48] sm:$0xff]
  %v269 = vld [vmem:[%s4 + $0x50] sm:$0xff]
  %v270 = vld [vmem:[%s4 + $0x58] sm:$0xff]
  %v271 = vld [vmem:[%s4 + $0x60] sm:$0xff]
  %v272 = vld [vmem:[%s4 + $0x68] sm:$0xff]
  %v273 = vld [vmem:[%s4 + $0x70] sm:$0xff]
  %v274 = vld [vmem:[%s4 + $0x78] sm:$0xff]
  %v275 = vld [vmem:[%s4 + $0x80] sm:$0xff]
  %v276 = vld [vmem:[%s4 + $0x88] sm:$0xff]
  %v277 = vld [vmem:[%s4 + $0x90] sm:$0xff]
  %v278 = vld [vmem:[%s4 + $0x98] sm:$0xff]
  %v279 = vld [vmem:[%s4 + $0xa0] sm:$0xff]
  %v280 = vld [vmem:[%s4 + $0xa8] sm:$0xff]
  %v281 = vld [vmem:[%s4 + $0xb0] sm:$0xff]
  %v282 = vld [vmem:[%s4 + $0xb8] sm:$0xff]
  %v283 = vld [vmem:[%s4 + $0xc0] sm:$0xff]
  %v284 = vld [vmem:[%s4 + $0xc8] sm:$0xff]
  %v285 = vld [vmem:[%s4 + $0xd0] sm:$0xff]
  %v286 = vld [vmem:[%s4 + $0xd8] sm:$0xff]
  %v287 = vld [vmem:[%s4 + $0xe0] sm:$0xff]
  %v288 = vld [vmem:[%s4 + $0xe8] sm:$0xff]
  %v289 = vld [vmem:[%s4 + $0xf0] sm:$0xff]
  %v290 = vld [vmem:[%s4 + $0xf8] sm:$0xff]
  %v291 = vld [vmem:[%s5] sm:$0x3]
  %v293 = vlaneseq
  %v294 = vshrl.u32 %v293, 7
  %v295 = vsub.s32 0, %v294
  %v296 = vrot.slane %v291, %v295
  %v297 = vlaneseq
  %v298 = vshrl.u32 %v297, 7
  %v299 = vsub.s32 1, %v298
  %v300 = vrot.slane %v291, %v299
  %303 = vmatprep.subr.mxu0 %v260
  %304 = vmatpush1.msra.mxu0 %v259
  %305 = vmatprep.subr.mxu0 %v262
  %306 = vmatpush1.msra.mxu0 %v261
  %307 = vmatprep.subr.mxu0 %v264
  %308 = vmatpush1.msra.mxu0 %v263
  %309 = vmatprep.subr.mxu0 %v266
  %310 = vmatpush1.msra.mxu0 %v265
  %311 = vmatprep.subr.mxu0 %v268
  %312 = vmatpush1.msra.mxu0 %v267
  %313 = vmatprep.subr.mxu0 %v270
  %314 = vmatpush1.msra.mxu0 %v269
  %315 = vmatprep.subr.mxu0 %v272
  %316 = vmatpush1.msra.mxu0 %v271
  %317 = vmatprep.subr.mxu0 %v274
  %318 = vmatpush1.msra.mxu0 %v273
  %319 = vmatprep.subr.mxu0 %v276
  %320 = vmatpush1.msra.mxu0 %v275
  %321 = vmatprep.subr.mxu0 %v278
  %322 = vmatpush1.msra.mxu0 %v277
  %323 = vmatprep.subr.mxu0 %v280
  %324 = vmatpush1.msra.mxu0 %v279
  %325 = vmatprep.subr.mxu0 %v282
  %326 = vmatpush1.msra.mxu0 %v281
  %327 = vmatprep.subr.mxu0 %v284
  %328 = vmatpush1.msra.mxu0 %v283
  %329 = vmatprep.subr.mxu0 %v286
  %330 = vmatpush1.msra.mxu0 %v285
  %331 = vmatprep.subr.mxu0 %v288
  %332 = vmatpush1.msra.mxu0 %v287
  %333 = vmatprep.subr.mxu0 %v290
  %334 = vmatpush1.msra.mxu0 %v289
  %335 = vmatprep.subr.mxu0 0.0
  %336 = vmatpush1.msra.mxu0 0.0
  %337 = vmatprep.subr.mxu0 0.0
  %338 = vmatpush1.msra.mxu0 0.0
  %339 = vmatprep.subr.mxu0 0.0
  %340 = vmatpush1.msra.mxu0 0.0
  %341 = vmatprep.subr.mxu0 0.0
  %342 = vmatpush1.msra.mxu0 0.0
  %343 = vmatprep.subr.mxu0 0.0
  %344 = vmatpush1.msra.mxu0 0.0
  %345 = vmatprep.subr.mxu0 0.0
  %346 = vmatpush1.msra.mxu0 0.0
  %347 = vmatprep.subr.mxu0 0.0
  %348 = vmatpush1.msra.mxu0 0.0
  %349 = vmatprep.subr.mxu0 0.0
  %350 = vmatpush1.msra.mxu0 0.0
  %351 = vmatprep.subr.mxu0 0.0
  %352 = vmatpush1.msra.mxu0 0.0
  %353 = vmatprep.subr.mxu0 0.0
  %354 = vmatpush1.msra.mxu0 0.0
  %355 = vmatprep.subr.mxu0 0.0
  %356 = vmatpush1.msra.mxu0 0.0
  %357 = vmatprep.subr.mxu0 0.0
  %358 = vmatpush1.msra.mxu0 0.0
  %359 = vmatprep.subr.mxu0 0.0
  %360 = vmatpush1.msra.mxu0 0.0
  %361 = vmatprep.subr.mxu0 0.0
  %362 = vmatpush1.msra.mxu0 0.0
  %363 = vmatprep.subr.mxu0 0.0
  %364 = vmatpush1.msra.mxu0 0.0
  %365 = vmatprep.subr.mxu0 0.0
  %366 = vmatpush1.msra.mxu0 0.0
  %367 = vmatprep.mubr.f32.mxu0 0.0
  %368 = vmatmul.mubr.f32.gmra.mrb[0].mxu0 %v257
  %v369 = vpop.f32.mrb[0].mxu0
  %v370 = vadd.f32 %v296, %v369
  %v371 = vpop.f32.mrb[0].mxu0
  %v372 = vadd.f32 %v300, %v371
  %373 = vmatprep.mubr.f32.mxu0 0.0
  %374 = vmatmul.mubr.f32.gmra.mrb[0].mxu0 %v258
  %v375 = vpop.f32.mrb[0].mxu0
  %v376 = vadd.f32 %v296, %v375
  %v377 = vpop.f32.mrb[0].mxu0
  %v378 = vadd.f32 %v300, %v377
  %379 = vdwg.mxu0
  %v380 = vmax.f32 %v370, 0.0
  %v381 = vmax.f32 %v376, 0.0
  %v382 = vxor.u32 %v372, 2147483648
  %v383 = vxor.u32 %v378, 2147483648
  %v384 = vmul.f32 %v382, 1.442695
  %v385 = vpow.pop %v384
  %v386 = vmul.f32 %v383, 1.442695
  %v387 = vpow.pop %v386
  %v388 = vadd.f32 %v385, 1.0
  %v389 = vadd.f32 %v387, 1.0
  %v390 = vrcp.pop %v388
  %v391 = vmul.f32 1.0, %v390
  %v392 = vrcp.pop %v389
  %v393 = vmul.f32 1.0, %v392
  %v394 = vmul.f32 %v391, %v380
  %v395 = vmul.f32 %v393, %v381
  %v396 = vsub.f32 1.0, %v391
  %v397 = vsub.f32 1.0, %v393
  %v398 = vmul.f32 %v396, %v257
  %v399 = vmul.f32 %v397, %v258
  %v400 = vadd.f32 %v394, %v398
  %v401 = vadd.f32 %v395, %v399
  %402 = vst [vmem:[%s6] sm:$0xff] %v400
  %403 = vst [vmem:[%s6 + $0x8] sm:$0xff] %v401
  // Predicated region
  $region26: #{embedding_forward.1} parent=0 // pred_check
    _
  $region27: #{embedding_forward.1} parent=0 // pred_check_branch
    %405 = sbr.rel (0) target = $region29
  $region28: #{embedding_forward.1} parent=0 // pred_region
    _
  $region29: #{embedding_forward.1} parent=0 // pred_fallthru
    _
  // Predicated region
  $region30: #{embedding_forward.1} parent=0 // pred_check
    _
  $region31: #{embedding_forward.1} parent=0 // pred_check_branch
    %407 = sbr.rel (0) target = $region33
  $region32: #{embedding_forward.1} parent=0 // pred_region
    _
  $region33: #{embedding_forward.1} parent=0 // pred_fallthru
    _

</llo_original>
